<compile_context>
chip_gen: v7x
topology: tpu7x:2x2x1
jax: 0.10.0
libtpu: 0.0.40
codegen_flags: <defaults>
</compile_context>

<pallas_src>
import functools

import jax
import jax.numpy as jnp
from jax.experimental import pallas as pl
from jax.experimental.pallas import tpu as pltpu


def _isolate_square_loss_kernel(
    x_ref, c_ref, lab_ref,
    sum_real_ref, sum_fake_ref, cnt_real_ref, cnt_fake_ref,
    *, r_real2, r_fake2, batch, tiles_per_split, tile_b,
):
    t = pl.program_id(1)

    # Zero the per-core accumulators at the start of each core's tile loop.
    @pl.when(t == 0)
    def _init():
        sum_real_ref[...] = jnp.zeros_like(sum_real_ref)
        sum_fake_ref[...] = jnp.zeros_like(sum_fake_ref)
        cnt_real_ref[...] = jnp.zeros_like(cnt_real_ref)
        cnt_fake_ref[...] = jnp.zeros_like(cnt_fake_ref)

    x = x_ref[...].astype(jnp.float32)        # (D, TB)  cast in VMEM, not in HBM
    c = c_ref[...].astype(jnp.float32)        # (D, 1)
    lab = lab_ref[...]                        # (1, TB) int32

    diff = x - c                              # broadcast over lanes (batch items)
    d2 = jnp.sum(diff * diff, axis=0, keepdims=True)     # (1, TB) squared L2 dist

    # Global batch index of each lane; masks the padded tail of a partial tile.
    tile_idx = pl.program_id(0) * tiles_per_split + t
    lane = jax.lax.broadcasted_iota(jnp.int32, d2.shape, 1) + tile_idx * tile_b
    valid = lane < batch

    real_mask = valid & (lab == 0)
    fake_mask = valid & (lab == 1)

    zero = jnp.zeros_like(d2)
    one = jnp.ones_like(d2)

    # Masked per-lane contributions (select, not multiply: robust to garbage in
    # padded lanes).  Cross-lane reductions are deferred to the epilogue.
    sum_real_ref[...] += jnp.where(real_mask, jnp.maximum(d2 - r_real2, 0.0), zero)
    sum_fake_ref[...] += jnp.where(fake_mask, jnp.maximum(r_fake2 - d2, 0.0), zero)
    cnt_real_ref[...] += jnp.where(real_mask, one, zero)
    cnt_fake_ref[...] += jnp.where(fake_mask, one, zero)


def isolate_square_loss(x, labels, center, r_real=0.042, r_fake=1.638, *, max_tile=512):
    """x: (B, D), labels: (B,) int, center: (1, D) or (D,) -> scalar f32 loss."""
    batch, feat_dim = x.shape

    # Lane-dense layout: batch -> lane axis (layout plumbing only, no compute).
    x_t = jnp.swapaxes(x, 0, 1)                          # (D, B), original dtype
    c_t = jnp.reshape(center, (feat_dim, 1))             # (D, 1), original dtype
    lab = labels.astype(jnp.int32).reshape(1, batch)     # (1, B)

    # Tile the batch along lanes.  If batch fits in one tile, use the exact
    # batch as the lane width (block dim == full array dim is always legal).
    tile_b = batch if batch <= max_tile else max_tile    # max_tile is a multiple of 128
    num_tiles = (batch + tile_b - 1) // tile_b
    # Megacore split for v7x (2 TCs).  With an odd tile count fall back to a
    # single serial slice (keeps all block indices trivially in range).
    nsplit = 2 if num_tiles % 2 == 0 else 1
    tps = num_tiles // nsplit

    kernel = functools.partial(
        _isolate_square_loss_kernel,
        r_real2=float(r_real) ** 2,
        r_fake2=float(r_fake) ** 2,
        batch=batch,
        tiles_per_split=tps,
        tile_b=tile_b,
    )

    acc_shape = jax.ShapeDtypeStruct((nsplit, 1, tile_b), jnp.float32)
    acc_spec = pl.BlockSpec((None, 1, tile_b), lambda c, t: (c, 0, 0))

    sum_real, sum_fake, cnt_real, cnt_fake = pl.pallas_call(
        kernel,
        out_shape=(acc_shape,) * 4,
        grid_spec=pltpu.PrefetchScalarGridSpec(
            num_scalar_prefetch=0,
            grid=(nsplit, tps),
            in_specs=[
                pl.BlockSpec((feat_dim, tile_b), lambda c, t: (0, c * tps + t)),  # x (D, B)
                pl.BlockSpec((feat_dim, 1), lambda c, t: (0, 0)),                 # center
                pl.BlockSpec((1, tile_b), lambda c, t: (0, c * tps + t)),         # labels
            ],
            out_specs=[acc_spec] * 4,
        ),
        compiler_params=pltpu.CompilerParams(
            dimension_semantics=("parallel", "arbitrary")),
    )(x_t, c_t, lab)

    # Tiny epilogue (a few KB): one reduce per accumulator + the two subset means.
    loss = (jnp.sum(sum_real) / jnp.sum(cnt_real)
            + jnp.sum(sum_fake) / jnp.sum(cnt_fake))
    return loss


def isolate_square_loss_ref(x, labels, center, r_real=0.042, r_fake=1.638):
    """Pure-JAX reference matching the PyTorch forward."""
    d2 = jnp.sum((x - jnp.reshape(center, (1, -1))) ** 2, axis=1)
    real = jnp.maximum(d2[labels == 0] - r_real ** 2, 0.0).mean()
    fake = jnp.maximum(r_fake ** 2 - d2[labels == 1], 0.0).mean()
    return real + fake


if __name__ == "__main__":
    r_real, r_fake = 0.042, 1.638
    key = jax.random.PRNGKey(0)

    # (batch, feat_dim): tiny single-tile case (module default feat_dim=2),
    # an even-tile case that exercises the 2-way parallel split + partial tail,
    # and an odd-tile case that exercises the serial multi-tile grid.
    cases = [(8, 2), (777, 2), (1536, 4)]

    for batch, feat_dim in cases:
        key, kx, kc, kl = jax.random.split(key, 4)
        x = jax.random.normal(kx, (batch, feat_dim), dtype=jnp.float32)
        center = jax.random.normal(kc, (1, feat_dim), dtype=jnp.float32)
        labels = jax.random.bernoulli(kl, 0.5, (batch,)).astype(jnp.int32)
        labels = labels.at[0].set(0).at[1].set(1)   # ensure both subsets non-empty

        loss = jax.block_until_ready(
            isolate_square_loss(x, labels, center, r_real, r_fake))
        ref = isolate_square_loss_ref(x, labels, center, r_real, r_fake)
        assert jnp.allclose(loss, ref, rtol=1e-5, atol=1e-5), (batch, feat_dim, loss, ref)

    print("KERNEL_OK")
</pallas_src>

<mosaic_0001>
module attributes {stable_mosaic.version = 11 : i64} {
  func.func @_isolate_square_loss_kernel(%arg0: i32, %arg1: i32, %arg2: memref<2x8xf32, #tpu.memory_space<vmem>>, %arg3: memref<2x1xf32, #tpu.memory_space<vmem>>, %arg4: memref<1x8xi32, #tpu.memory_space<vmem>>, %arg5: memref<1x1x8xf32, #tpu.memory_space<vmem>>, %arg6: memref<1x1x8xf32, #tpu.memory_space<vmem>>, %arg7: memref<1x1x8xf32, #tpu.memory_space<vmem>>, %arg8: memref<1x1x8xf32, #tpu.memory_space<vmem>>) attributes {dimension_semantics = [#tpu.dimension_semantics<parallel>, #tpu.dimension_semantics<arbitrary>], iteration_bounds = array<i64: 1, 1>, scalar_prefetch = 0 : i64, scratch_operands = 0 : i64, tpu.core_type = #tpu.core_type<tc>, window_params = [{transform_indices = @transform_0, window_bounds = array<i64: 2, 8>}, {pipeline_mode = #tpu.pipeline_mode<synchronous>, transform_indices = @transform_1, window_bounds = array<i64: 2, 1>}, {transform_indices = @transform_2, window_bounds = array<i64: 1, 8>}, {transform_indices = @transform_3, window_bounds = array<i64: 1, 1, 8>}, {transform_indices = @transform_4, window_bounds = array<i64: 1, 1, 8>}, {transform_indices = @transform_5, window_bounds = array<i64: 1, 1, 8>}, {transform_indices = @transform_6, window_bounds = array<i64: 1, 1, 8>}]} {
    %c0_i32 = arith.constant 0 : i32
    %0 = arith.cmpi eq, %arg1, %c0_i32 : i32
    %1 = arith.extui %0 : i1 to i32
    %c0_i32_0 = arith.constant 0 : i32
    %2 = arith.cmpi ne, %1, %c0_i32_0 : i32
    scf.if %2 {
      %cst_39 = arith.constant 0.000000e+00 : f32
      %63 = vector.broadcast %cst_39 : f32 to vector<1x8xf32>
      %c0_40 = arith.constant 0 : index
      %c0_41 = arith.constant 0 : index
      %c0_42 = arith.constant 0 : index
      %64 = vector.load %arg5[%c0_40, %c0_41, %c0_42] : memref<1x1x8xf32, #tpu.memory_space<vmem>>, vector<1x1x8xf32>
      %65 = vector.shape_cast %64 : vector<1x1x8xf32> to vector<1x8xf32>
      %66 = vector.shape_cast %63 : vector<1x8xf32> to vector<1x1x8xf32>
      tpu.vector_store %arg5[%c0_40, %c0_41, %c0_42], %66 {strides = array<i32>} : memref<1x1x8xf32, #tpu.memory_space<vmem>>, vector<1x1x8xf32>,
      %cst_43 = arith.constant 0.000000e+00 : f32
      %67 = vector.broadcast %cst_43 : f32 to vector<1x8xf32>
      %c0_44 = arith.constant 0 : index
      %c0_45 = arith.constant 0 : index
      %c0_46 = arith.constant 0 : index
      %68 = vector.load %arg6[%c0_44, %c0_45, %c0_46] : memref<1x1x8xf32, #tpu.memory_space<vmem>>, vector<1x1x8xf32>
      %69 = vector.shape_cast %68 : vector<1x1x8xf32> to vector<1x8xf32>
      %70 = vector.shape_cast %67 : vector<1x8xf32> to vector<1x1x8xf32>
      tpu.vector_store %arg6[%c0_44, %c0_45, %c0_46], %70 {strides = array<i32>} : memref<1x1x8xf32, #tpu.memory_space<vmem>>, vector<1x1x8xf32>,
      %cst_47 = arith.constant 0.000000e+00 : f32
      %71 = vector.broadcast %cst_47 : f32 to vector<1x8xf32>
      %c0_48 = arith.constant 0 : index
      %c0_49 = arith.constant 0 : index
      %c0_50 = arith.constant 0 : index
      %72 = vector.load %arg7[%c0_48, %c0_49, %c0_50] : memref<1x1x8xf32, #tpu.memory_space<vmem>>, vector<1x1x8xf32>
      %73 = vector.shape_cast %72 : vector<1x1x8xf32> to vector<1x8xf32>
      %74 = vector.shape_cast %71 : vector<1x8xf32> to vector<1x1x8xf32>
      tpu.vector_store %arg7[%c0_48, %c0_49, %c0_50], %74 {strides = array<i32>} : memref<1x1x8xf32, #tpu.memory_space<vmem>>, vector<1x1x8xf32>,
      %cst_51 = arith.constant 0.000000e+00 : f32
      %75 = vector.broadcast %cst_51 : f32 to vector<1x8xf32>
      %c0_52 = arith.constant 0 : index
      %c0_53 = arith.constant 0 : index
      %c0_54 = arith.constant 0 : index
      %76 = vector.load %arg8[%c0_52, %c0_53, %c0_54] : memref<1x1x8xf32, #tpu.memory_space<vmem>>, vector<1x1x8xf32>
      %77 = vector.shape_cast %76 : vector<1x1x8xf32> to vector<1x8xf32>
      %78 = vector.shape_cast %75 : vector<1x8xf32> to vector<1x1x8xf32>
      tpu.vector_store %arg8[%c0_52, %c0_53, %c0_54], %78 {strides = array<i32>} : memref<1x1x8xf32, #tpu.memory_space<vmem>>, vector<1x1x8xf32>,
    } else {
    }
    %c0 = arith.constant 0 : index
    %c0_1 = arith.constant 0 : index
    %3 = vector.load %arg2[%c0, %c0_1] : memref<2x8xf32, #tpu.memory_space<vmem>>, vector<2x8xf32>
    %c0_2 = arith.constant 0 : index
    %c0_3 = arith.constant 0 : index
    %4 = vector.load %arg3[%c0_2, %c0_3] : memref<2x1xf32, #tpu.memory_space<vmem>>, vector<2x1xf32>
    %c0_4 = arith.constant 0 : index
    %c0_5 = arith.constant 0 : index
    %5 = vector.load %arg4[%c0_4, %c0_5] : memref<1x8xi32, #tpu.memory_space<vmem>>, vector<1x8xi32>
    %6 = vector.broadcast %4 : vector<2x1xf32> to vector<2x8xf32>
    %7 = arith.subf %3, %6 : vector<2x8xf32>
    %8 = arith.mulf %7, %7 : vector<2x8xf32>
    %cst = arith.constant dense<0.000000e+00> : vector<8xf32>
    %9 = vector.multi_reduction <add>, %8, %cst [0] : vector<2x8xf32> to vector<8xf32>
    %10 = vector.shape_cast %9 : vector<8xf32> to vector<1x8xf32>
    %c1_i32 = arith.constant 1 : i32
    %11 = arith.muli %arg0, %c1_i32 : i32
    %12 = arith.addi %11, %arg1 : i32
    %13 = tpu.iota {dimensions = array<i32: 1>} : vector<1x8xi32>
    %c8_i32 = arith.constant 8 : i32
    %14 = arith.muli %12, %c8_i32 : i32
    %15 = vector.broadcast %14 : i32 to vector<1x8xi32>
    %16 = arith.addi %13, %15 : vector<1x8xi32>
    %c8_i32_6 = arith.constant 8 : i32
    %17 = vector.broadcast %c8_i32_6 : i32 to vector<1x8xi32>
    %18 = arith.cmpi slt, %16, %17 : vector<1x8xi32>
    %c0_i32_7 = arith.constant 0 : i32
    %19 = vector.broadcast %c0_i32_7 : i32 to vector<1x8xi32>
    %20 = arith.cmpi eq, %5, %19 : vector<1x8xi32>
    %21 = arith.andi %18, %20 : vector<1x8xi1>
    %c1_i32_8 = arith.constant 1 : i32
    %22 = vector.broadcast %c1_i32_8 : i32 to vector<1x8xi32>
    %23 = arith.cmpi eq, %5, %22 : vector<1x8xi32>
    %24 = arith.andi %18, %23 : vector<1x8xi1>
    %cst_9 = arith.constant 0.000000e+00 : f32
    %25 = vector.broadcast %cst_9 : f32 to vector<1x8xf32>
    %cst_10 = arith.constant 1.000000e+00 : f32
    %26 = vector.broadcast %cst_10 : f32 to vector<1x8xf32>
    %c0_11 = arith.constant 0 : index
    %c0_12 = arith.constant 0 : index
    %c0_13 = arith.constant 0 : index
    %27 = vector.load %arg5[%c0_11, %c0_12, %c0_13] : memref<1x1x8xf32, #tpu.memory_space<vmem>>, vector<1x1x8xf32>
    %28 = vector.shape_cast %27 : vector<1x1x8xf32> to vector<1x8xf32>
    %cst_14 = arith.constant 1.764000e-03 : f32
    %29 = vector.broadcast %cst_14 : f32 to vector<1x8xf32>
    %30 = arith.subf %10, %29 : vector<1x8xf32>
    %cst_15 = arith.constant 0.000000e+00 : f32
    %31 = vector.broadcast %cst_15 : f32 to vector<1x8xf32>
    %32 = arith.maximumf %30, %31 : vector<1x8xf32>
    %33 = arith.select %21, %32, %25 : vector<1x8xi1>, vector<1x8xf32>
    %34 = arith.addf %28, %33 : vector<1x8xf32>
    %c0_16 = arith.constant 0 : index
    %c0_17 = arith.constant 0 : index
    %c0_18 = arith.constant 0 : index
    %35 = vector.load %arg5[%c0_16, %c0_17, %c0_18] : memref<1x1x8xf32, #tpu.memory_space<vmem>>, vector<1x1x8xf32>
    %36 = vector.shape_cast %35 : vector<1x1x8xf32> to vector<1x8xf32>
    %37 = vector.shape_cast %34 : vector<1x8xf32> to vector<1x1x8xf32>
    tpu.vector_store %arg5[%c0_16, %c0_17, %c0_18], %37 {strides = array<i32>} : memref<1x1x8xf32, #tpu.memory_space<vmem>>, vector<1x1x8xf32>,
    %c0_19 = arith.constant 0 : index
    %c0_20 = arith.constant 0 : index
    %c0_21 = arith.constant 0 : index
    %38 = vector.load %arg6[%c0_19, %c0_20, %c0_21] : memref<1x1x8xf32, #tpu.memory_space<vmem>>, vector<1x1x8xf32>
    %39 = vector.shape_cast %38 : vector<1x1x8xf32> to vector<1x8xf32>
    %cst_22 = arith.constant 2.68304396 : f32
    %40 = vector.broadcast %cst_22 : f32 to vector<1x8xf32>
    %41 = arith.subf %40, %10 : vector<1x8xf32>
    %cst_23 = arith.constant 0.000000e+00 : f32
    %42 = vector.broadcast %cst_23 : f32 to vector<1x8xf32>
    %43 = arith.maximumf %41, %42 : vector<1x8xf32>
    %44 = arith.select %24, %43, %25 : vector<1x8xi1>, vector<1x8xf32>
    %45 = arith.addf %39, %44 : vector<1x8xf32>
    %c0_24 = arith.constant 0 : index
    %c0_25 = arith.constant 0 : index
    %c0_26 = arith.constant 0 : index
    %46 = vector.load %arg6[%c0_24, %c0_25, %c0_26] : memref<1x1x8xf32, #tpu.memory_space<vmem>>, vector<1x1x8xf32>
    %47 = vector.shape_cast %46 : vector<1x1x8xf32> to vector<1x8xf32>
    %48 = vector.shape_cast %45 : vector<1x8xf32> to vector<1x1x8xf32>
    tpu.vector_store %arg6[%c0_24, %c0_25, %c0_26], %48 {strides = array<i32>} : memref<1x1x8xf32, #tpu.memory_space<vmem>>, vector<1x1x8xf32>,
    %c0_27 = arith.constant 0 : index
    %c0_28 = arith.constant 0 : index
    %c0_29 = arith.constant 0 : index
    %49 = vector.load %arg7[%c0_27, %c0_28, %c0_29] : memref<1x1x8xf32, #tpu.memory_space<vmem>>, vector<1x1x8xf32>
    %50 = vector.shape_cast %49 : vector<1x1x8xf32> to vector<1x8xf32>
    %51 = arith.select %21, %26, %25 : vector<1x8xi1>, vector<1x8xf32>
    %52 = arith.addf %50, %51 : vector<1x8xf32>
    %c0_30 = arith.constant 0 : index
    %c0_31 = arith.constant 0 : index
    %c0_32 = arith.constant 0 : index
    %53 = vector.load %arg7[%c0_30, %c0_31, %c0_32] : memref<1x1x8xf32, #tpu.memory_space<vmem>>, vector<1x1x8xf32>
    %54 = vector.shape_cast %53 : vector<1x1x8xf32> to vector<1x8xf32>
    %55 = vector.shape_cast %52 : vector<1x8xf32> to vector<1x1x8xf32>
    tpu.vector_store %arg7[%c0_30, %c0_31, %c0_32], %55 {strides = array<i32>} : memref<1x1x8xf32, #tpu.memory_space<vmem>>, vector<1x1x8xf32>,
    %c0_33 = arith.constant 0 : index
    %c0_34 = arith.constant 0 : index
    %c0_35 = arith.constant 0 : index
    %56 = vector.load %arg8[%c0_33, %c0_34, %c0_35] : memref<1x1x8xf32, #tpu.memory_space<vmem>>, vector<1x1x8xf32>
    %57 = vector.shape_cast %56 : vector<1x1x8xf32> to vector<1x8xf32>
    %58 = arith.select %24, %26, %25 : vector<1x8xi1>, vector<1x8xf32>
    %59 = arith.addf %57, %58 : vector<1x8xf32>
    %c0_36 = arith.constant 0 : index
    %c0_37 = arith.constant 0 : index
    %c0_38 = arith.constant 0 : index
    %60 = vector.load %arg8[%c0_36, %c0_37, %c0_38] : memref<1x1x8xf32, #tpu.memory_space<vmem>>, vector<1x1x8xf32>
    %61 = vector.shape_cast %60 : vector<1x1x8xf32> to vector<1x8xf32>
    %62 = vector.shape_cast %59 : vector<1x8xf32> to vector<1x1x8xf32>
    tpu.vector_store %arg8[%c0_36, %c0_37, %c0_38], %62 {strides = array<i32>} : memref<1x1x8xf32, #tpu.memory_space<vmem>>, vector<1x1x8xf32>,
    return
  }
  func.func @transform_0(%arg0: i32, %arg1: i32) -> (i32, i32) {
    %c1_i32 = arith.constant 1 : i32
    %0 = arith.muli %arg0, %c1_i32 : i32
    %1 = arith.addi %0, %arg1 : i32
    %c0_i32 = arith.constant 0 : i32
    %c0_i32_0 = arith.constant 0 : i32
    return %c0_i32, %1 : i32, i32
  }
  func.func @transform_1(%arg0: i32, %arg1: i32) -> (i32, i32) {
    %c0_i32 = arith.constant 0 : i32
    %c0_i32_0 = arith.constant 0 : i32
    %c0_i32_1 = arith.constant 0 : i32
    return %c0_i32, %c0_i32_0 : i32, i32
  }
  func.func @transform_2(%arg0: i32, %arg1: i32) -> (i32, i32) {
    %c1_i32 = arith.constant 1 : i32
    %0 = arith.muli %arg0, %c1_i32 : i32
    %1 = arith.addi %0, %arg1 : i32
    %c0_i32 = arith.constant 0 : i32
    %c0_i32_0 = arith.constant 0 : i32
    return %c0_i32, %1 : i32, i32
  }
  func.func @transform_3(%arg0: i32, %arg1: i32) -> (i32, i32, i32) {
    %c0_i32 = arith.constant 0 : i32
    %c0_i32_0 = arith.constant 0 : i32
    %c0_i32_1 = arith.constant 0 : i32
    return %arg0, %c0_i32, %c0_i32_0 : i32, i32, i32
  }
  func.func @transform_4(%arg0: i32, %arg1: i32) -> (i32, i32, i32) {
    %c0_i32 = arith.constant 0 : i32
    %c0_i32_0 = arith.constant 0 : i32
    %c0_i32_1 = arith.constant 0 : i32
    return %arg0, %c0_i32, %c0_i32_0 : i32, i32, i32
  }
  func.func @transform_5(%arg0: i32, %arg1: i32) -> (i32, i32, i32) {
    %c0_i32 = arith.constant 0 : i32
    %c0_i32_0 = arith.constant 0 : i32
    %c0_i32_1 = arith.constant 0 : i32
    return %arg0, %c0_i32, %c0_i32_0 : i32, i32, i32
  }
  func.func @transform_6(%arg0: i32, %arg1: i32) -> (i32, i32, i32) {
    %c0_i32 = arith.constant 0 : i32
    %c0_i32_0 = arith.constant 0 : i32
    %c0_i32_1 = arith.constant 0 : i32
    return %arg0, %c0_i32, %c0_i32_0 : i32, i32, i32
  }
}

</mosaic_0001>

<llo_original>
// kernel: tpu_custom_call.1
$region0: #{tpu_custom_call.1}
  #allocation0 [shape = 'u32[]', space=smem, size = 0x4, offset = 0x4, fixed_abs, tag = 'smem constant byte address 0x4 - core index']
  #allocation1 [shape = 'u32[144,128]{1,0:T(1,128)}', space=vmem, size = 0x12000, scoped, tag = 'internal scratch']
  %s0 = inlined_call_operand.vmem [shape: f32[2,8], index: 0, kind: input, shape index: {}]
  %s1 = inlined_call_operand.vmem [shape: f32[2,1], index: 1, kind: input, shape index: {}]
  %s2 = inlined_call_operand.vmem [shape: s32[1,8], index: 2, kind: input, shape index: {}]
  %s3 = inlined_call_operand.hbm [shape: f32[1,1,8], index: 3, kind: output, shape index: {0}]
  %s4 = inlined_call_operand.hbm [shape: f32[1,1,8], index: 4, kind: output, shape index: {1}]
  %s5 = inlined_call_operand.hbm [shape: f32[1,1,8], index: 5, kind: output, shape index: {2}]
  %s6 = inlined_call_operand.hbm [shape: f32[1,1,8], index: 6, kind: output, shape index: {3}]
  %7 = xla_tuple %s3, %s4, %s5, %s6
  %s8 = sld [smem:[#allocation0]]
  $region50: #{tpu_custom_call.1} parent=0
    _
  %s10 = ssub.s32 1, %s8
  %s11 = scalar_select 0, %s10, %s8
  $region1: #{tpu_custom_call.1} parent=0
    #allocation2 [shape = 'u8[512]{0}', space=vmem, size = 0x400, scoped, tag = 'output window, operand 0, single buffered']
    #allocation3 [shape = 's32[1]{0}', space=sflag, size = 0x4, scoped, tag = 'scoped memory for tpu_custom_call.1']
    #allocation4 [shape = 'u8[512]{0}', space=vmem, size = 0x400, scoped, tag = 'output window, operand 1, single buffered']
    #allocation5 [shape = 's32[1]{0}', space=sflag, size = 0x4, scoped, tag = 'scoped memory for tpu_custom_call.1']
    #allocation6 [shape = 'u8[512]{0}', space=vmem, size = 0x400, scoped, tag = 'output window, operand 2, single buffered']
    #allocation7 [shape = 'u8[512]{0}', space=vmem, size = 0x400, scoped, tag = 'output window, operand 3, single buffered']
    #allocation8 [shape = 's32[1]{0}', space=sflag, size = 0x4, scoped, tag = 'scoped memory for tpu_custom_call.1']
    %12 = vsyncpa [#allocation3], 0
    %13 = vsyncpa [#allocation5], 0
    %14 = vsyncpa [#allocation8], 0
    // Predicated region
    $region2: #{tpu_custom_call.1} parent=1 // pred_check
      _
    $region3: #{tpu_custom_call.1} parent=1 // pred_check_branch
      %16 = sbr.rel (0) target = $region5
    $region4: #{tpu_custom_call.1} parent=1 // pred_region
      %s17 = sadd.s32 0, 0
      %p18 = scmp.lt.s32.totalorder %s17, 0
      %s19 = scalar_select %p18, %s17, 0
      %s20 = smul.addr %s19, 2
      %s21 = scalar_lea.vmem %s0, %s20
      %s22 = sadd.s32 0, 0
    $region5: #{tpu_custom_call.1} parent=1 // pred_fallthru
      _
    // Predicated region
    $region6: #{tpu_custom_call.1} parent=1 // pred_check
      _
    $region7: #{tpu_custom_call.1} parent=1 // pred_check_branch
      %24 = sbr.rel (0) target = $region9
    $region8: #{tpu_custom_call.1} parent=1 // pred_region
      _
    $region9: #{tpu_custom_call.1} parent=1 // pred_fallthru
      _
    // Predicated region
    $region10: #{tpu_custom_call.1} parent=1 // pred_check
      _
    $region11: #{tpu_custom_call.1} parent=1 // pred_check_branch
      %26 = sbr.rel (0) target = $region13
    $region12: #{tpu_custom_call.1} parent=1 // pred_region
      %s27 = sadd.s32 0, 0
      %p28 = scmp.lt.s32.totalorder %s27, 0
      %s29 = scalar_select %p28, %s27, 0
      %s30 = scalar_lea.vmem %s2, %s29
      %s31 = sadd.s32 0, 0
    $region13: #{tpu_custom_call.1} parent=1 // pred_fallthru
      _
    %s32 = sadd.s32 0, 0
    %p33 = scmp.lt.s32.totalorder %s32, 0
    %s34 = scalar_select %p33, %s32, 0
    %s35 = smul.addr %s34, 2
    %s36 = scalar_lea.vmem %s0, %s35
    %s37 = sadd.s32 0, 0
    %p38 = scmp.lt.s32.totalorder %s37, 0
    %s39 = scalar_select %p38, %s37, 0
    %s40 = scalar_lea.vmem %s2, %s39
    %s41 = sadd.s32 0, 0
    %p42 = scmp.lt.s32.totalorder %s41, 0
    %s43 = scalar_select %p42, %s41, 0
    %s44 = smul.addr %s43, 2
    %s45 = scalar_lea.vmem %s0, %s44
    %s46 = sadd.s32 0, 0
    %s47 = sadd.s32 0, 0
    %p48 = scmp.lt.s32.totalorder %s47, 0
    %s49 = scalar_select %p48, %s47, 0
    %s50 = scalar_lea.vmem %s2, %s49
    %s51 = sadd.s32 0, 0
    %p52 = scmp.eq.s32.totalorder 0, 0
    // Predicated region
    $region14: #{tpu_custom_call.1} parent=1 // pred_check
      %p53 = pneg %p52
    $region15: #{tpu_custom_call.1} parent=1 // pred_check_branch
      %55 = sbr.rel (%p53) target = $region17
    $region16: #{tpu_custom_call.1} parent=1 // pred_region
      %vm56 = vcmask 57344
      %57 = vst.msk [vmem:[#allocation2] sm:$0x1] %vm56, 0.0
      %58 = vst.msk [vmem:[#allocation4] sm:$0x1] %vm56, 0.0
      %59 = vst.msk [vmem:[#allocation6] sm:$0x1] %vm56, 0.0
      %60 = vst.msk [vmem:[#allocation7] sm:$0x1] %vm56, 0.0
    $region17: #{tpu_custom_call.1} parent=1 // pred_fallthru
      _
    %v61 = vld [vmem:[%s45] sm:$0x3]
    %v62 = vld [vmem:[%s1] sm:$0x3]
    %v63 = vld [vmem:[%s50] sm:$0x1]
    %65 = vset.pattern.permute.xlu0 0
    %66 = vperm.xlu0 %65, %v62
    %v67 = vpop.permute.xlu0 %66
    %v69 = vsub.f32 %v61, %v67
    %v70 = vmul.f32 %v69, %v69
    %vm71 = vcmask 58368
    %v72 = vsel %vm71, %v70, 0.0
    %v73 = vrot.slane %v72, 4
    %v74 = vadd.f32 %v72, %v73
    %v75 = vrot.slane %v74, 2
    %v76 = vadd.f32 %v74, %v75
    %v77 = vrot.slane %v76, 1
    %v78 = vadd.f32 %v76, %v77
    %s79 = sadd.s32 0, 0
    %v80 = vlaneseq
    %v81 = vand.u32 %v80, 127
    %s82 = smul.u32 %s79, 8
    %v83 = vstv %s82
    %v84 = vadd.s32 %v81, %v83
    %vm85 = vcmp.lt.s32.totalorder %v84, 8
    %vm86 = vcmp.eq.s32.totalorder %v63, 0
    %vm87 = vmand %vm85, %vm86
    %vm88 = vcmp.eq.s32.totalorder %v63, 1
    %vm89 = vmand %vm85, %vm88
    %v90 = vld [vmem:[#allocation2] sm:$0x1]
    %v91 = vsub.f32 %v78, 0.001764
    %v92 = vmax.f32 %v91, 0.0
    %v93 = vsel %vm87, %v92, 0.0
    %v94 = vadd.f32 %v90, %v93
    %vm95 = vcmask 57344
    %96 = vst.msk [vmem:[#allocation2] sm:$0x1] %vm95, %v94
    %v97 = vld [vmem:[#allocation4] sm:$0x1]
    %v98 = vsub.f32 2.683044, %v78
    %v99 = vmax.f32 %v98, 0.0
    %v100 = vsel %vm89, %v99, 0.0
    %v101 = vadd.f32 %v97, %v100
    %102 = vst.msk [vmem:[#allocation4] sm:$0x1] %vm95, %v101
    %v103 = vld [vmem:[#allocation6] sm:$0x1]
    %v104 = vsel %vm87, 1.0, 0.0
    %v105 = vadd.f32 %v103, %v104
    %106 = vst.msk [vmem:[#allocation6] sm:$0x1] %vm95, %v105
    %v107 = vld [vmem:[#allocation7] sm:$0x1]
    %v108 = vsel %vm89, 1.0, 0.0
    %v109 = vadd.f32 %v107, %v108
    %110 = vst.msk [vmem:[#allocation7] sm:$0x1] %vm95, %v109
    // Predicated region
    $region18: #{tpu_custom_call.1} parent=1 // pred_check
      _
    $region19: #{tpu_custom_call.1} parent=1 // pred_check_branch
      %112 = sbr.rel (0) target = $region21
    $region20: #{tpu_custom_call.1} parent=1 // pred_region
      %s114 = ssub.s32 16, 16
      %115 = vsyncadd [#allocation3], %s114
      %s117 = sshll.u32 [#allocation2], 4
      %s118 = int_to_ptr.vmem [resolvable:$true] %s117
      %120 = dma.vmem_to_hbm [thread:$0]  %s118, 16, %s3, [#allocation3]
    $region21: #{tpu_custom_call.1} parent=1 // pred_fallthru
      _
    // Predicated region
    $region22: #{tpu_custom_call.1} parent=1 // pred_check
      _
    $region23: #{tpu_custom_call.1} parent=1 // pred_check_branch
      %122 = sbr.rel (0) target = $region25
    $region24: #{tpu_custom_call.1} parent=1 // pred_region
      %s124 = ssub.s32 16, 16
      %125 = vsyncadd [#allocation5], %s124
      %s127 = sshll.u32 [#allocation4], 4
      %s128 = int_to_ptr.vmem [resolvable:$true] %s127
      %130 = dma.vmem_to_hbm [thread:$0]  %s128, 16, %s4, [#allocation5]
    $region25: #{tpu_custom_call.1} parent=1 // pred_fallthru
      _
    // Predicated region
    $region26: #{tpu_custom_call.1} parent=1 // pred_check
      _
    $region27: #{tpu_custom_call.1} parent=1 // pred_check_branch
      %132 = sbr.rel (0) target = $region29
    $region28: #{tpu_custom_call.1} parent=1 // pred_region
      %s134 = ssub.s32 16, 16
      %135 = vsyncadd [#allocation5], %s134
      %s137 = sshll.u32 [#allocation6], 4
      %s138 = int_to_ptr.vmem [resolvable:$true] %s137
      %140 = dma.vmem_to_hbm [thread:$0]  %s138, 16, %s5, [#allocation5]
    $region29: #{tpu_custom_call.1} parent=1 // pred_fallthru
      _
    // Predicated region
    $region30: #{tpu_custom_call.1} parent=1 // pred_check
      _
    $region31: #{tpu_custom_call.1} parent=1 // pred_check_branch
      %142 = sbr.rel (0) target = $region33
    $region32: #{tpu_custom_call.1} parent=1 // pred_region
      %s144 = ssub.s32 16, 16
      %145 = vsyncadd [#allocation8], %s144
      %s147 = sshll.u32 [#allocation7], 4
      %s148 = int_to_ptr.vmem [resolvable:$true] %s147
      %150 = dma.vmem_to_hbm [thread:$0]  %s148, 16, %s6, [#allocation8]
    $region33: #{tpu_custom_call.1} parent=1 // pred_fallthru
      _
    // Predicated region
    $region34: #{tpu_custom_call.1} parent=1 // pred_check
      _
    $region35: #{tpu_custom_call.1} parent=1 // pred_check_branch
      %152 = sbr.rel (0) target = $region37
    $region36: #{tpu_custom_call.1} parent=1 // pred_region
      %153 = dma.done [#allocation3], 16
    $region37: #{tpu_custom_call.1} parent=1 // pred_fallthru
      _
    // Predicated region
    $region38: #{tpu_custom_call.1} parent=1 // pred_check
      _
    $region39: #{tpu_custom_call.1} parent=1 // pred_check_branch
      %155 = sbr.rel (0) target = $region41
    $region40: #{tpu_custom_call.1} parent=1 // pred_region
      %156 = dma.done [#allocation5], 16
    $region41: #{tpu_custom_call.1} parent=1 // pred_fallthru
      _
    // Predicated region
    $region42: #{tpu_custom_call.1} parent=1 // pred_check
      _
    $region43: #{tpu_custom_call.1} parent=1 // pred_check_branch
      %158 = sbr.rel (0) target = $region45
    $region44: #{tpu_custom_call.1} parent=1 // pred_region
      %159 = dma.done [#allocation5], 16
    $region45: #{tpu_custom_call.1} parent=1 // pred_fallthru
      _
    // Predicated region
    $region46: #{tpu_custom_call.1} parent=1 // pred_check
      _
    $region47: #{tpu_custom_call.1} parent=1 // pred_check_branch
      %161 = sbr.rel (0) target = $region49
    $region48: #{tpu_custom_call.1} parent=1 // pred_region
      %162 = dma.done [#allocation8], 16
    $region49: #{tpu_custom_call.1} parent=1 // pred_fallthru
      _
    %163 = vsyncpa [#allocation3], 1
    %164 = vsyncpa [#allocation5], 1
    %165 = vsyncpa [#allocation8], 1

</llo_original>
